<compile_context>
chip_gen: v7x
topology: tpu7x:2x2x1
jax: 0.10.0
libtpu: 0.0.40
codegen_flags: <defaults>
</compile_context>

<pallas_src>
import functools

import jax
import jax.numpy as jnp
from jax.experimental import pallas as pl
from jax.experimental.pallas import tpu as pltpu

_INV_SQRT2 = 0.7071067811865476


def _gelu(x, approximate):
    if approximate:
        # tanh-approx GELU -> EUP slot (frees the VALU on v6e/v7x). Slightly
        # different numerics from nn.GELU()'s default erf formulation.
        return jax.nn.gelu(x, approximate=True)
    # nn.GELU() default: 0.5 * x * (1 + erf(x / sqrt(2))), computed in f32.
    return 0.5 * x * (1.0 + jax.lax.erf(x * _INV_SQRT2))


def _round_up(x, m):
    return ((x + m - 1) // m) * m


def _vmem_budget_bytes():
    """Physical VMEM with ~25% headroom (~96 MiB v5e/v6e, ~48 MiB v7x)."""
    cap = None
    try:
        cap = getattr(pltpu.get_tpu_info(), "vmem_capacity_bytes", None)
    except Exception:
        cap = None
    if not cap:
        cap = 128 * 1024 * 1024
    return (int(cap) * 3) // 4


def _vmem_need_bytes(tm, th, n_wbuf, d_in, do_pad, x_isz, out_isz, with_acc):
    w_slab = d_in * th * 2 + th * do_pad * 2 + th * 4     # w1 + w2 (bf16) + b1 (f32)
    fixed = do_pad * 4                                    # b2 (f32, single-buffered)
    io = 2 * tm * d_in * x_isz + 2 * tm * do_pad * out_isz  # double-buffered x / out
    acc = tm * do_pad * 4 if with_acc else 0
    return n_wbuf * w_slab + fixed + io + acc


def _choose_tiles(m, d_in, h, do_pad, x_isz, out_isz, budget, tile_m):
    """Pick (tm, th). Prefer th == h (weights VMEM-resident, fetched once)."""
    row_align = 16  # bf16 native (16, 128) tiling
    tm_cap = _round_up(min(tile_m, _round_up(m, row_align)), row_align)
    tm_cands = [tm_cap] + [t for t in (1024, 512, 256, 128, 64, 32, 16)
                           if t < tm_cap]

    # 1) Preferred: full hidden dimension resident (single-buffered weights).
    for tm in tm_cands:
        if _vmem_need_bytes(tm, h, 1, d_in, do_pad, x_isz, out_isz, False) <= budget:
            return tm, h

    # 2) Fallback: tile H (weights re-streamed once per row tile) -> keep tm as
    #    large as possible so per-step MXU time covers the slab DMA.
    th_cands = [t for t in range((h // 128) * 128 - 128, 0, -128) if h % t == 0]
    for tm in tm_cands:
        for th in th_cands:
            if _vmem_need_bytes(tm, th, 2, d_in, do_pad, x_isz, out_isz, True) <= budget:
                return tm, th

    # 3) Last resort: smallest tiles.
    return tm_cands[-1], (th_cands[-1] if th_cands else h)


def _mlp_kernel_resident(x_ref, w1_ref, b1_ref, w2_ref, b2_ref, o_ref,
                         *, compute_dtype, approx_gelu):
    # Grid = (row tiles i [parallel],). Weights are grid-invariant (resident).
    xb = x_ref[...].astype(compute_dtype)                 # f32 -> bf16 on the VPU
    h = jnp.dot(xb, w1_ref[...], preferred_element_type=jnp.float32)
    h = _gelu(h + b1_ref[...], approx_gelu)
    y = jnp.dot(h.astype(compute_dtype), w2_ref[...],
                preferred_element_type=jnp.float32)
    o_ref[...] = (y + b2_ref[...]).astype(o_ref.dtype)


def _mlp_kernel_htiled(x_ref, w1_ref, b1_ref, w2_ref, b2_ref, o_ref, acc_ref,
                       *, compute_dtype, approx_gelu):
    # Grid = (row tiles i [parallel], hidden tiles j [arbitrary / reduction]).
    j = pl.program_id(1)

    @pl.when(j == 0)
    def _():
        # Seed accumulator with the fc2 bias -> no separate final add.
        acc_ref[...] = jnp.broadcast_to(b2_ref[...], acc_ref.shape)

    xb = x_ref[...].astype(compute_dtype)
    h = jnp.dot(xb, w1_ref[...], preferred_element_type=jnp.float32)
    h = _gelu(h + b1_ref[...], approx_gelu)
    acc_ref[...] += jnp.dot(h.astype(compute_dtype), w2_ref[...],
                            preferred_element_type=jnp.float32)

    @pl.when(j == pl.num_programs(1) - 1)
    def _():
        o_ref[...] = acc_ref[...].astype(o_ref.dtype)


@functools.partial(jax.jit,
                   static_argnames=("tile_m", "approx_gelu", "compute_dtype"))
def mlp_forward(x, w1, b1, w2, b2, *, tile_m=1024, approx_gelu=False,
                compute_dtype=jnp.bfloat16):
    """x: (B, N, D_in); w1 (D_in, H), b1 (1, H), w2 (H, D_out), b2 (1, D_out)."""
    B, N, D_in = x.shape
    H = w1.shape[1]
    D_out = w2.shape[1]
    out_dtype = x.dtype
    x_isz = jnp.dtype(x.dtype).itemsize
    out_isz = jnp.dtype(out_dtype).itemsize

    M = B * N
    x2d = x.reshape(M, D_in)

    # Lane-dense output: pad D_out (and w2/b2 columns) to a multiple of 128.
    Do_pad = _round_up(D_out, 128)
    if Do_pad != D_out:
        w2 = jnp.pad(w2, ((0, 0), (0, Do_pad - D_out)))
        b2 = jnp.pad(b2, ((0, 0), (0, Do_pad - D_out)))

    budget = _vmem_budget_bytes()
    tm, th = _choose_tiles(M, D_in, H, Do_pad, x_isz, out_isz, budget, tile_m)

    M_pad = _round_up(M, tm)
    if M_pad != M:
        x2d = jnp.pad(x2d, ((0, M_pad - M), (0, 0)))

    grid_m = M_pad // tm
    grid_h = H // th

    # Weights/biases: bf16 matmuls with f32 accumulation; biases stay f32.
    # (If params are reused across many calls, pre-cast them to bf16 once.)
    w1c = w1.astype(compute_dtype)
    w2c = w2.astype(compute_dtype)
    b1f = b1.astype(jnp.float32)
    b2f = b2.astype(jnp.float32)

    w_isz = jnp.dtype(compute_dtype).itemsize
    weight_bytes = (D_in * H + H * Do_pad) * w_isz + (H + Do_pad) * 4
    weight_streams = 1 if grid_h == 1 else grid_m
    cost = pl.CostEstimate(
        flops=2 * M_pad * D_in * H + 2 * M_pad * H * Do_pad,
        transcendentals=M_pad * H,
        bytes_accessed=(M_pad * D_in * x_isz
                        + weight_streams * weight_bytes
                        + M_pad * Do_pad * out_isz),
    )

    # TODO(synk): on v7x with tiny grid_m (short sequences), add a second
    # parallel grid axis over output columns so both TensorCores get work.

    if grid_h == 1:
        def inv(shape):
            # Grid-invariant operand: single-buffer to halve its VMEM footprint.
            return pl.BlockSpec(shape, lambda i: (0, 0),
                                pipeline_mode=pl.Buffered(1))

        out2d = pl.pallas_call(
            functools.partial(_mlp_kernel_resident,
                              compute_dtype=compute_dtype,
                              approx_gelu=approx_gelu),
            out_shape=jax.ShapeDtypeStruct((M_pad, Do_pad), out_dtype),
            grid_spec=pltpu.PrefetchScalarGridSpec(
                num_scalar_prefetch=0,
                grid=(grid_m,),
                in_specs=[
                    pl.BlockSpec((tm, D_in), lambda i: (i, 0)),
                    inv((D_in, H)),
                    inv((1, H)),
                    inv((H, Do_pad)),
                    inv((1, Do_pad)),
                ],
                out_specs=pl.BlockSpec((tm, Do_pad), lambda i: (i, 0)),
            ),
            compiler_params=pltpu.CompilerParams(
                dimension_semantics=("parallel",),
                vmem_limit_bytes=budget,
            ),
            cost_estimate=cost,
        )(x2d, w1c, b1f, w2c, b2f)
    else:
        out2d = pl.pallas_call(
            functools.partial(_mlp_kernel_htiled,
                              compute_dtype=compute_dtype,
                              approx_gelu=approx_gelu),
            out_shape=jax.ShapeDtypeStruct((M_pad, Do_pad), out_dtype),
            grid_spec=pltpu.PrefetchScalarGridSpec(
                num_scalar_prefetch=0,
                grid=(grid_m, grid_h),
                in_specs=[
                    pl.BlockSpec((tm, D_in), lambda i, j: (i, 0)),
                    pl.BlockSpec((D_in, th), lambda i, j: (0, j)),
                    pl.BlockSpec((1, th), lambda i, j: (0, j)),
                    pl.BlockSpec((th, Do_pad), lambda i, j: (j, 0)),
                    pl.BlockSpec((1, Do_pad), lambda i, j: (0, 0),
                                 pipeline_mode=pl.Buffered(1)),
                ],
                out_specs=pl.BlockSpec((tm, Do_pad), lambda i, j: (i, 0)),
                scratch_shapes=[pltpu.VMEM((tm, Do_pad), jnp.float32)],
            ),
            compiler_params=pltpu.CompilerParams(
                dimension_semantics=("parallel", "arbitrary"),
                vmem_limit_bytes=budget,
            ),
            cost_estimate=cost,
        )(x2d, w1c, b1f, w2c, b2f)

    return out2d[:M, :D_out].reshape(B, N, D_out)


def init_mlp_params(key, in_features, hidden_features, out_features, dtype=jnp.float32):
    """Deterministic synthetic parameters with PyTorch Linear semantics, stored (in, out)."""
    k1, k2, k3, k4 = jax.random.split(key, 4)
    # PyTorch fc1.weight is (hidden, in) -> stored transposed as (in, hidden).
    w1 = jax.random.normal(k1, (in_features, hidden_features), dtype) * 0.02
    b1 = jax.random.normal(k2, (1, hidden_features), dtype) * 0.02
    # PyTorch fc2.weight is (out, hidden) -> stored transposed as (hidden, out).
    w2 = jax.random.normal(k3, (hidden_features, out_features), dtype) * 0.02
    b2 = jax.random.normal(k4, (1, out_features), dtype) * 0.02
    return w1, b1, w2, b2


if __name__ == "__main__":
    key = jax.random.PRNGKey(0)
    kx, kp = jax.random.split(key)

    B, N = 2, 8              # batch, sequence length (tokens)
    in_features = 32
    hidden_features = 64
    out_features = 32        # out_features defaults to in_features in the module

    x = jax.random.normal(kx, (B, N, in_features), jnp.float32)
    w1, b1, w2, b2 = init_mlp_params(kp, in_features, hidden_features, out_features)

    out = mlp_forward(x, w1, b1, w2, b2)
    jax.block_until_ready(out)

    # Pure-JAX f32 reference (same math; dropout p=0.0 is identity).
    def ref_mlp(xin):
        h = xin.reshape(-1, in_features) @ w1 + b1
        h = 0.5 * h * (1.0 + jax.lax.erf(h / jnp.sqrt(2.0)))
        return (h @ w2 + b2).reshape(xin.shape[0], xin.shape[1], out_features)

    y_ref = ref_mlp(x)
    assert out.shape == (B, N, out_features)
    # bf16 matmul / f32 accumulate vs. pure-f32 reference -> loose-ish tolerance.
    assert jnp.allclose(out, y_ref, atol=2e-3, rtol=2e-2), \
        float(jnp.max(jnp.abs(out - y_ref)))

    # Exercise the ragged-row padding path (M = 14 is not 16-aligned).
    x2 = jax.random.normal(kx, (2, 7, in_features), jnp.float32)
    out2 = mlp_forward(x2, w1, b1, w2, b2)
    jax.block_until_ready(out2)
    y_ref2 = ref_mlp(x2)
    assert out2.shape == (2, 7, out_features)
    assert jnp.allclose(out2, y_ref2, atol=2e-3, rtol=2e-2), \
        float(jnp.max(jnp.abs(out2 - y_ref2)))

    print("KERNEL_OK")
</pallas_src>

<mosaic_0001>
module attributes {stable_mosaic.version = 11 : i64} {
  func.func @_mlp_kernel_resident(%arg0: i32, %arg1: memref<16x32xf32, #tpu.memory_space<vmem>>, %arg2: memref<32x64xbf16, #tpu.memory_space<vmem>>, %arg3: memref<1x64xf32, #tpu.memory_space<vmem>>, %arg4: memref<64x128xbf16, #tpu.memory_space<vmem>>, %arg5: memref<1x128xf32, #tpu.memory_space<vmem>>, %arg6: memref<16x128xf32, #tpu.memory_space<vmem>>) attributes {dimension_semantics = [#tpu.dimension_semantics<parallel>], iteration_bounds = array<i64: 1>, scalar_prefetch = 0 : i64, scratch_operands = 0 : i64, tpu.core_type = #tpu.core_type<tc>, window_params = [{transform_indices = @transform_0, window_bounds = array<i64: 16, 32>}, {pipeline_mode = #tpu.pipeline_mode<synchronous>, transform_indices = @transform_1, window_bounds = array<i64: 32, 64>}, {pipeline_mode = #tpu.pipeline_mode<synchronous>, transform_indices = @transform_2, window_bounds = array<i64: 1, 64>}, {pipeline_mode = #tpu.pipeline_mode<synchronous>, transform_indices = @transform_3, window_bounds = array<i64: 64, 128>}, {pipeline_mode = #tpu.pipeline_mode<synchronous>, transform_indices = @transform_4, window_bounds = array<i64: 1, 128>}, {transform_indices = @transform_5, window_bounds = array<i64: 16, 128>}]} {
    %c0 = arith.constant 0 : index
    %c0_0 = arith.constant 0 : index
    %0 = vector.load %arg1[%c0, %c0_0] : memref<16x32xf32, #tpu.memory_space<vmem>>, vector<16x32xf32>
    %1 = arith.truncf %0 : vector<16x32xf32> to vector<16x32xbf16>
    %c0_1 = arith.constant 0 : index
    %c0_2 = arith.constant 0 : index
    %2 = vector.load %arg2[%c0_1, %c0_2] : memref<32x64xbf16, #tpu.memory_space<vmem>>, vector<32x64xbf16>
    %cst = arith.constant dense<0.000000e+00> : vector<16x64xf32>
    %3 = tpu.matmul %1, %2, %cst {dimension_numbers = #tpu.dot_dimension_numbers<[1], [0], [0], [1], [0, 0, 1, 1], [], []>} : vector<16x32xbf16>, vector<32x64xbf16>, vector<16x64xf32> -> vector<16x64xf32>
    %c0_3 = arith.constant 0 : index
    %c0_4 = arith.constant 0 : index
    %4 = vector.load %arg3[%c0_3, %c0_4] : memref<1x64xf32, #tpu.memory_space<vmem>>, vector<1x64xf32>
    %5 = vector.broadcast %4 : vector<1x64xf32> to vector<16x64xf32>
    %6 = arith.addf %3, %5 : vector<16x64xf32>
    %cst_5 = arith.constant 5.000000e-01 : f32
    %7 = vector.broadcast %cst_5 : f32 to vector<16x64xf32>
    %8 = arith.mulf %7, %6 : vector<16x64xf32>
    %cst_6 = arith.constant 0.707106769 : f32
    %9 = vector.broadcast %cst_6 : f32 to vector<16x64xf32>
    %10 = arith.mulf %6, %9 : vector<16x64xf32>
    %11 = math.erf %10 : vector<16x64xf32>
    %cst_7 = arith.constant 1.000000e+00 : f32
    %12 = vector.broadcast %cst_7 : f32 to vector<16x64xf32>
    %13 = arith.addf %12, %11 : vector<16x64xf32>
    %14 = arith.mulf %8, %13 : vector<16x64xf32>
    %15 = arith.truncf %14 : vector<16x64xf32> to vector<16x64xbf16>
    %c0_8 = arith.constant 0 : index
    %c0_9 = arith.constant 0 : index
    %16 = vector.load %arg4[%c0_8, %c0_9] : memref<64x128xbf16, #tpu.memory_space<vmem>>, vector<64x128xbf16>
    %cst_10 = arith.constant dense<0.000000e+00> : vector<16x128xf32>
    %17 = tpu.matmul %15, %16, %cst_10 {dimension_numbers = #tpu.dot_dimension_numbers<[1], [0], [0], [1], [0, 0, 1, 1], [], []>} : vector<16x64xbf16>, vector<64x128xbf16>, vector<16x128xf32> -> vector<16x128xf32>
    %c0_11 = arith.constant 0 : index
    %c0_12 = arith.constant 0 : index
    %18 = vector.load %arg5[%c0_11, %c0_12] : memref<1x128xf32, #tpu.memory_space<vmem>>, vector<1x128xf32>
    %19 = vector.broadcast %18 : vector<1x128xf32> to vector<16x128xf32>
    %20 = arith.addf %17, %19 : vector<16x128xf32>
    %c0_13 = arith.constant 0 : index
    %c0_14 = arith.constant 0 : index
    %21 = vector.load %arg6[%c0_13, %c0_14] : memref<16x128xf32, #tpu.memory_space<vmem>>, vector<16x128xf32>
    tpu.vector_store %arg6[%c0_13, %c0_14], %20 {strides = array<i32>} : memref<16x128xf32, #tpu.memory_space<vmem>>, vector<16x128xf32>,
    return
  }
  func.func @transform_0(%arg0: i32) -> (i32, i32) {
    %c0_i32 = arith.constant 0 : i32
    %c0_i32_0 = arith.constant 0 : i32
    return %arg0, %c0_i32 : i32, i32
  }
  func.func @transform_1(%arg0: i32) -> (i32, i32) {
    %c0_i32 = arith.constant 0 : i32
    %c0_i32_0 = arith.constant 0 : i32
    %c0_i32_1 = arith.constant 0 : i32
    return %c0_i32, %c0_i32_0 : i32, i32
  }
  func.func @transform_2(%arg0: i32) -> (i32, i32) {
    %c0_i32 = arith.constant 0 : i32
    %c0_i32_0 = arith.constant 0 : i32
    %c0_i32_1 = arith.constant 0 : i32
    return %c0_i32, %c0_i32_0 : i32, i32
  }
  func.func @transform_3(%arg0: i32) -> (i32, i32) {
    %c0_i32 = arith.constant 0 : i32
    %c0_i32_0 = arith.constant 0 : i32
    %c0_i32_1 = arith.constant 0 : i32
    return %c0_i32, %c0_i32_0 : i32, i32
  }
  func.func @transform_4(%arg0: i32) -> (i32, i32) {
    %c0_i32 = arith.constant 0 : i32
    %c0_i32_0 = arith.constant 0 : i32
    %c0_i32_1 = arith.constant 0 : i32
    return %c0_i32, %c0_i32_0 : i32, i32
  }
  func.func @transform_5(%arg0: i32) -> (i32, i32) {
    %c0_i32 = arith.constant 0 : i32
    %c0_i32_0 = arith.constant 0 : i32
    return %arg0, %c0_i32 : i32, i32
  }
}

</mosaic_0001>

<llo_original>
// kernel: mlp_forward.1
$region0: #{mlp_forward.1}
  #allocation0 [shape = 'u32[]', space=smem, size = 0x4, offset = 0x4, fixed_abs, tag = 'smem constant byte address 0x4 - core index']
  #allocation1 [shape = 'u32[144,128]{1,0:T(1,128)}', space=vmem, size = 0x12000, scoped, tag = 'internal scratch']
  %s0 = inlined_call_operand.hbm [shape: f32[16,32], index: 0, kind: input, shape index: {}]
  %s1 = inlined_call_operand.hbm [shape: bf16[32,64], index: 1, kind: input, shape index: {}]
  %s2 = inlined_call_operand.hbm [shape: f32[1,64], index: 2, kind: input, shape index: {}]
  %s3 = inlined_call_operand.hbm [shape: bf16[64,128], index: 3, kind: input, shape index: {}]
  %s4 = inlined_call_operand.hbm [shape: f32[1,128], index: 4, kind: input, shape index: {}]
  %s5 = inlined_call_operand.hbm [shape: f32[16,128], index: 5, kind: output, shape index: {}]
  %s6 = sld [smem:[#allocation0]]
  $region50: #{mlp_forward.1} parent=0
    _
  %s8 = ssub.s32 1, %s6
  %s9 = scalar_select 0, %s8, %s6
  $region1: #{mlp_forward.1} parent=0
    #allocation2 [shape = 'u8[8192]{0}', space=vmem, size = 0x2000, scoped, tag = 'input window, operand 0, single buffered']
    #allocation3 [shape = 's32[1]{0}', space=sflag, size = 0x4, scoped, tag = 'scoped memory for mlp_forward.1']
    #allocation4 [shape = 's32[1]{0}', space=sflag, size = 0x4, scoped, tag = 'scoped memory for mlp_forward.1']
    #allocation5 [shape = 'u8[8192]{0}', space=vmem, size = 0x2000, scoped, tag = 'input window, operand 1, single buffered']
    #allocation6 [shape = 's32[1]{0}', space=sflag, size = 0x4, scoped, tag = 'scoped memory for mlp_forward.1']
    #allocation7 [shape = 'u8[512]{0}', space=vmem, size = 0x400, scoped, tag = 'input window, operand 2, single buffered']
    #allocation8 [shape = 'u8[16384]{0}', space=vmem, size = 0x4000, scoped, tag = 'input window, operand 3, single buffered']
    #allocation9 [shape = 's32[1]{0}', space=sflag, size = 0x4, scoped, tag = 'scoped memory for mlp_forward.1']
    #allocation10 [shape = 'u8[512]{0}', space=vmem, size = 0x400, scoped, tag = 'input window, operand 4, single buffered']
    #allocation11 [shape = 'u8[8192]{0}', space=vmem, size = 0x2000, scoped, tag = 'output window, operand 0, single buffered']
    %10 = vsyncpa [#allocation3], 0
    %11 = vsyncpa [#allocation6], 0
    %12 = vsyncpa [#allocation9], 0
    %13 = vsyncpa [#allocation4], 0
    // Predicated region
    $region2: #{mlp_forward.1} parent=1 // pred_check
      _
    $region3: #{mlp_forward.1} parent=1 // pred_check_branch
      %15 = sbr.rel (0) target = $region5
    $region4: #{mlp_forward.1} parent=1 // pred_region
      %s17 = ssub.s32 256, 256
      %18 = vsyncadd [#allocation3], %s17
      %s19 = sshll.u32 [#allocation2], 4
      %s20 = int_to_ptr.vmem [resolvable:$true] %s19
      %25 = dma.hbm_to_vmem [thread:$0]  %s0, 256, %s20, [#allocation3], 128, 128, 8
    $region5: #{mlp_forward.1} parent=1 // pred_fallthru
      _
    // Predicated region
    $region6: #{mlp_forward.1} parent=1 // pred_check
      _
    $region7: #{mlp_forward.1} parent=1 // pred_check_branch
      %27 = sbr.rel (0) target = $region9
    $region8: #{mlp_forward.1} parent=1 // pred_region
      %s29 = ssub.s32 256, 256
      %30 = vsyncadd [#allocation6], %s29
      %s31 = sshll.u32 [#allocation5], 4
      %s32 = int_to_ptr.vmem [resolvable:$true] %s31
      %37 = dma.hbm_to_vmem [thread:$0]  %s1, 256, %s32, [#allocation6], 64, 64, 4
    $region9: #{mlp_forward.1} parent=1 // pred_fallthru
      _
    // Predicated region
    $region10: #{mlp_forward.1} parent=1 // pred_check
      _
    $region11: #{mlp_forward.1} parent=1 // pred_check_branch
      %39 = sbr.rel (0) target = $region13
    $region12: #{mlp_forward.1} parent=1 // pred_region
      %s41 = ssub.s32 16, 16
      %42 = vsyncadd [#allocation6], %s41
      %s44 = sshll.u32 [#allocation7], 4
      %s45 = int_to_ptr.vmem [resolvable:$true] %s44
      %47 = dma.hbm_to_vmem [thread:$0]  %s2, 16, %s45, [#allocation6]
    $region13: #{mlp_forward.1} parent=1 // pred_fallthru
      _
    // Predicated region
    $region14: #{mlp_forward.1} parent=1 // pred_check
      _
    $region15: #{mlp_forward.1} parent=1 // pred_check_branch
      %49 = sbr.rel (0) target = $region17
    $region16: #{mlp_forward.1} parent=1 // pred_region
      %s51 = ssub.s32 512, 512
      %52 = vsyncadd [#allocation9], %s51
      %s53 = sshll.u32 [#allocation8], 4
      %s54 = int_to_ptr.vmem [resolvable:$true] %s53
      %59 = dma.hbm_to_vmem [thread:$0]  %s3, 512, %s54, [#allocation9], 64, 64, 4
    $region17: #{mlp_forward.1} parent=1 // pred_fallthru
      _
    // Predicated region
    $region18: #{mlp_forward.1} parent=1 // pred_check
      _
    $region19: #{mlp_forward.1} parent=1 // pred_check_branch
      %61 = sbr.rel (0) target = $region21
    $region20: #{mlp_forward.1} parent=1 // pred_region
      %s63 = ssub.s32 16, 16
      %64 = vsyncadd [#allocation9], %s63
      %s66 = sshll.u32 [#allocation10], 4
      %s67 = int_to_ptr.vmem [resolvable:$true] %s66
      %69 = dma.hbm_to_vmem [thread:$0]  %s4, 16, %s67, [#allocation9]
    $region21: #{mlp_forward.1} parent=1 // pred_fallthru
      _
    // Predicated region
    $region22: #{mlp_forward.1} parent=1 // pred_check
      _
    $region23: #{mlp_forward.1} parent=1 // pred_check_branch
      %71 = sbr.rel (0) target = $region25
    $region24: #{mlp_forward.1} parent=1 // pred_region
      %72 = dma.done [#allocation3], 256
    $region25: #{mlp_forward.1} parent=1 // pred_fallthru
      _
    // Predicated region
    $region26: #{mlp_forward.1} parent=1 // pred_check
      _
    $region27: #{mlp_forward.1} parent=1 // pred_check_branch
      %74 = sbr.rel (0) target = $region29
    $region28: #{mlp_forward.1} parent=1 // pred_region
      %75 = dma.done [#allocation6], 256
    $region29: #{mlp_forward.1} parent=1 // pred_fallthru
      _
    // Predicated region
    $region30: #{mlp_forward.1} parent=1 // pred_check
      _
    $region31: #{mlp_forward.1} parent=1 // pred_check_branch
      %77 = sbr.rel (0) target = $region33
    $region32: #{mlp_forward.1} parent=1 // pred_region
      %78 = dma.done [#allocation6], 16
    $region33: #{mlp_forward.1} parent=1 // pred_fallthru
      _
    // Predicated region
    $region34: #{mlp_forward.1} parent=1 // pred_check
      _
    $region35: #{mlp_forward.1} parent=1 // pred_check_branch
      %80 = sbr.rel (0) target = $region37
    $region36: #{mlp_forward.1} parent=1 // pred_region
      %81 = dma.done [#allocation9], 512
    $region37: #{mlp_forward.1} parent=1 // pred_fallthru
      _
    // Predicated region
    $region38: #{mlp_forward.1} parent=1 // pred_check
      _
    $region39: #{mlp_forward.1} parent=1 // pred_check_branch
      %83 = sbr.rel (0) target = $region41
    $region40: #{mlp_forward.1} parent=1 // pred_region
      %84 = dma.done [#allocation9], 16
    $region41: #{mlp_forward.1} parent=1 // pred_fallthru
      _
    %v86 = vld [vmem:[#allocation2] sm:$0xff]
    %v87 = vld [vmem:[#allocation2 + $0x8] sm:$0xff]
    %v88 = vpack.c.bf16 %v87, %v86
    %v89 = vld [vmem:[#allocation5] sm:$0xf]
    %v90 = vld [vmem:[#allocation5 + $0x4] sm:$0xf]
    %v91 = vld [vmem:[#allocation5 + $0x8] sm:$0xf]
    %v92 = vld [vmem:[#allocation5 + $0xc] sm:$0xf]
    %v93 = vld [vmem:[#allocation7] sm:$0x1]
    %v95 = vlaneseq
    %v96 = vshrl.u32 %v95, 7
    %v97 = vsub.s32 0, %v96
    %v98 = vrot.slane %v93, %v97
    %v104 = vunpack.c.l.b16 %v89
    %v105 = vunpack.c.l.b16 %v90
    %v106 = vunpack.c.l.b16 %v91
    %v107 = vunpack.c.l.b16 %v92
    %v108 = vpack.c.b16 %v105, %v104
    %v109 = vpack.c.b16 %v107, %v106
    %vm112 = vcmask 261120
    %v114 = vsel %vm112, %v88, 0
    %116 = vmatprep.subr.bf16.mxu0 0
    %117 = vmatpush1.bf16.msra.mxu0 %v108
    %118 = vmatprep.subr.bf16.mxu0 0
    %119 = vmatpush1.bf16.msra.mxu0 %v109
    %120 = vmatprep.subr.bf16.mxu0 0
    %121 = vmatpush1.bf16.msra.mxu0 0
    %122 = vmatprep.subr.bf16.mxu0 0
    %123 = vmatpush1.bf16.msra.mxu0 0
    %124 = vmatprep.subr.bf16.mxu0 0
    %125 = vmatpush1.bf16.msra.mxu0 0
    %126 = vmatprep.subr.bf16.mxu0 0
    %127 = vmatpush1.bf16.msra.mxu0 0
    %128 = vmatprep.subr.bf16.mxu0 0
    %129 = vmatpush1.bf16.msra.mxu0 0
    %130 = vmatprep.subr.bf16.mxu0 0
    %131 = vmatpush1.bf16.msra.mxu0 0
    %132 = vmatprep.subr.bf16.mxu0 0
    %133 = vmatpush1.bf16.msra.mxu0 0
    %134 = vmatprep.subr.bf16.mxu0 0
    %135 = vmatpush1.bf16.msra.mxu0 0
    %136 = vmatprep.subr.bf16.mxu0 0
    %137 = vmatpush1.bf16.msra.mxu0 0
    %138 = vmatprep.subr.bf16.mxu0 0
    %139 = vmatpush1.bf16.msra.mxu0 0
    %140 = vmatprep.subr.bf16.mxu0 0
    %141 = vmatpush1.bf16.msra.mxu0 0
    %142 = vmatprep.subr.bf16.mxu0 0
    %143 = vmatpush1.bf16.msra.mxu0 0
    %144 = vmatprep.subr.bf16.mxu0 0
    %145 = vmatpush1.bf16.msra.mxu0 0
    %146 = vmatprep.subr.bf16.mxu0 0
    %147 = vmatpush1.bf16.msra.mxu0 0
    %148 = vmatprep.mubr.bf16.mxu0 0
    %149 = vmatmul.mubr.bf16.gmra.mrb[0].mxu0 %v114
    %v150 = vpop.f32.mrb[0].mxu0
    %v151 = vadd.f32 %v98, %v150
    %v152 = vpop.f32.mrb[0].mxu0
    %v153 = vpop.f32.mrb[0].mxu0
    %v154 = vadd.f32 %v98, %v153
    %v155 = vpop.f32.mrb[0].mxu0
    %156 = vdwg.mxu0
    %v157 = vmul.f32 %v151, 0.5
    %v158 = vmul.f32 %v154, 0.5
    %v159 = vmul.f32 %v151, 0.70710677
    %v160 = vmul.f32 %v154, 0.70710677
    %v161 = verf.f32.pop %v159
    %v162 = verf.f32.pop %v160
    %v163 = vadd.f32 %v161, 1.0
    %v164 = vadd.f32 %v162, 1.0
    %v165 = vmul.f32 %v157, %v163
    %v166 = vmul.f32 %v158, %v164
    %v167 = vpack.c.bf16 %v166, %v165
    %v168 = vld [vmem:[#allocation8] sm:$0xf]
    %v169 = vld [vmem:[#allocation8 + $0x4] sm:$0xf]
    %v170 = vld [vmem:[#allocation8 + $0x8] sm:$0xf]
    %v171 = vld [vmem:[#allocation8 + $0xc] sm:$0xf]
    %v172 = vld [vmem:[#allocation8 + $0x10] sm:$0xf]
    %v173 = vld [vmem:[#allocation8 + $0x14] sm:$0xf]
    %v174 = vld [vmem:[#allocation8 + $0x18] sm:$0xf]
    %v175 = vld [vmem:[#allocation8 + $0x1c] sm:$0xf]
    %v176 = vld [vmem:[#allocation10] sm:$0x1]
    %v178 = vlaneseq
    %v179 = vshrl.u32 %v178, 7
    %v180 = vsub.s32 0, %v179
    %v181 = vrot.slane %v176, %v180
    %v191 = vunpack.c.l.b16 %v168
    %v192 = vunpack.c.l.b16 %v169
    %v193 = vunpack.c.l.b16 %v170
    %v194 = vunpack.c.l.b16 %v171
    %v195 = vunpack.c.l.b16 %v172
    %v196 = vunpack.c.l.b16 %v173
    %v197 = vunpack.c.l.b16 %v174
    %v198 = vunpack.c.l.b16 %v175
    %v199 = vpack.c.b16 %v192, %v191
    %v200 = vpack.c.b16 %v194, %v193
    %v201 = vpack.c.b16 %v196, %v195
    %v202 = vpack.c.b16 %v198, %v197
    %vm207 = vcmask 523264
    %v209 = vsel %vm207, %v167, 0
    %211 = vmatprep.subr.bf16.mxu0 0
    %212 = vmatpush1.bf16.msra.mxu0 %v199
    %213 = vmatprep.subr.bf16.mxu0 0
    %214 = vmatpush1.bf16.msra.mxu0 %v200
    %215 = vmatprep.subr.bf16.mxu0 0
    %216 = vmatpush1.bf16.msra.mxu0 %v201
    %217 = vmatprep.subr.bf16.mxu0 0
    %218 = vmatpush1.bf16.msra.mxu0 %v202
    %219 = vmatprep.subr.bf16.mxu0 0
    %220 = vmatpush1.bf16.msra.mxu0 0
    %221 = vmatprep.subr.bf16.mxu0 0
    %222 = vmatpush1.bf16.msra.mxu0 0
    %223 = vmatprep.subr.bf16.mxu0 0
    %224 = vmatpush1.bf16.msra.mxu0 0
    %225 = vmatprep.subr.bf16.mxu0 0
    %226 = vmatpush1.bf16.msra.mxu0 0
    %227 = vmatprep.subr.bf16.mxu0 0
    %228 = vmatpush1.bf16.msra.mxu0 0
    %229 = vmatprep.subr.bf16.mxu0 0
    %230 = vmatpush1.bf16.msra.mxu0 0
    %231 = vmatprep.subr.bf16.mxu0 0
    %232 = vmatpush1.bf16.msra.mxu0 0
    %233 = vmatprep.subr.bf16.mxu0 0
    %234 = vmatpush1.bf16.msra.mxu0 0
    %235 = vmatprep.subr.bf16.mxu0 0
    %236 = vmatpush1.bf16.msra.mxu0 0
    %237 = vmatprep.subr.bf16.mxu0 0
    %238 = vmatpush1.bf16.msra.mxu0 0
    %239 = vmatprep.subr.bf16.mxu0 0
    %240 = vmatpush1.bf16.msra.mxu0 0
    %241 = vmatprep.subr.bf16.mxu0 0
    %242 = vmatpush1.bf16.msra.mxu0 0
    %243 = vmatprep.mubr.bf16.mxu0 0
    %244 = vmatmul.mubr.bf16.gmra.mrb[0].mxu0 %v209
    %v245 = vpop.f32.mrb[0].mxu0
    %v246 = vadd.f32 %v181, %v245
    %v247 = vpop.f32.mrb[0].mxu0
    %v248 = vpop.f32.mrb[0].mxu0
    %v249 = vadd.f32 %v181, %v248
    %v250 = vpop.f32.mrb[0].mxu0
    %251 = vdwg.mxu0
    %252 = vst [vmem:[#allocation11] sm:$0xff] %v246
    %253 = vst [vmem:[#allocation11 + $0x8] sm:$0xff] %v249
    // Predicated region
    $region42: #{mlp_forward.1} parent=1 // pred_check
      _
    $region43: #{mlp_forward.1} parent=1 // pred_check_branch
      %255 = sbr.rel (0) target = $region45
    $region44: #{mlp_forward.1} parent=1 // pred_region
      %s257 = ssub.s32 256, 256
      %258 = vsyncadd [#allocation4], %s257
      %s259 = sshll.u32 [#allocation11], 4
      %s260 = int_to_ptr.vmem [resolvable:$true] %s259
      %265 = dma.vmem_to_hbm [thread:$0]  %s260, 256, %s5, [#allocation4], 128, 128, 8
    $region45: #{mlp_forward.1} parent=1 // pred_fallthru
      _
    // Predicated region
    $region46: #{mlp_forward.1} parent=1 // pred_check
      _
    $region47: #{mlp_forward.1} parent=1 // pred_check_branch
      %267 = sbr.rel (0) target = $region49
    $region48: #{mlp_forward.1} parent=1 // pred_region
      %268 = dma.done [#allocation4], 256
    $region49: #{mlp_forward.1} parent=1 // pred_fallthru
      _
    %269 = vsyncpa [#allocation3], 1
    %270 = vsyncpa [#allocation6], 1
    %271 = vsyncpa [#allocation9], 1
    %272 = vsyncpa [#allocation4], 1

</llo_original>
